<compile_context>
chip_gen: v6e
topology: v6e:2x2x1
jax: 0.10.0
libtpu: 0.0.40
codegen_flags: <defaults>
</compile_context>

<pallas_src>
import functools

import jax
import jax.numpy as jnp
from jax.experimental import pallas as pl
from jax.experimental.pallas import tpu as pltpu


# Contract dim 0 of both operands (C_in or k*C_in) -> result (TL, E).
_DN = (((0,), (0,)), ((), ()))


def _tap_views(x_ref, *, tile_l, n_tiles):
    """Load this tile's halo'd window; return the k = 0, 1, 2 tap views."""
    if n_tiles == 1:
        start = 0  # single tile: fully static slicing
    else:
        # tile_l is a multiple of 128, so this dynamic lane offset is aligned.
        start = pl.multiple_of(pl.program_id(1) * tile_l, tile_l)
    xt = x_ref[0, :, pl.ds(start, tile_l + 2)]          # (C_in, TL + 2)
    return xt[:, 0:tile_l], xt[:, 1:tile_l + 1], xt[:, 2:tile_l + 2]


def _kernel_dense(x_ref, w_ref, b_ref, o_ref, *, tile_l, n_tiles, group):
    # x_ref: (1, C_in, Lp+2)   zero-padded input row, VMEM-resident per batch b
    # w_ref: (3*C_in, E)       conv weight, tap-major im2col layout
    # b_ref: (1, group*E)      bias tiled `group` times along lanes
    # o_ref: (1, TL//group, group*E)  lane-dense output tile
    t0, t1, t2 = _tap_views(x_ref, tile_l=tile_l, n_tiles=n_tiles)
    lhs_t = jnp.concatenate([t0, t1, t2], axis=0)        # (3*C_in, TL), sublane stack
    acc = jax.lax.dot_general(lhs_t, w_ref[...], _DN,
                              preferred_element_type=jnp.float32)   # (TL, E)
    e = acc.shape[-1]
    # Row-major regrouping (TL, E) -> (TL//group, group*E): same flat buffer,
    # but the store is now fully lane-dense (128 lanes) instead of masked.
    dense = acc.reshape(tile_l // group, group * e) + b_ref[...]
    o_ref[0] = dense.astype(o_ref.dtype)


def _kernel_plain(x_ref, w_ref, b_ref, o_ref, *, tile_l, n_tiles):
    # Conservative fallback: three dots, (TL, E) store (E < 128 => masked vst).
    # w_ref: (3, C_in, E); b_ref: (1, E); o_ref: (1, TL, E)
    t0, t1, t2 = _tap_views(x_ref, tile_l=tile_l, n_tiles=n_tiles)
    acc = jax.lax.dot_general(t0, w_ref[0], _DN, preferred_element_type=jnp.float32)
    acc = acc + jax.lax.dot_general(t1, w_ref[1], _DN, preferred_element_type=jnp.float32)
    acc = acc + jax.lax.dot_general(t2, w_ref[2], _DN, preferred_element_type=jnp.float32)
    o_ref[0] = (acc + b_ref[...]).astype(o_ref.dtype)


def _round_up(x, m):
    return (x + m - 1) // m * m


def _largest_divisor(n, upper):
    best = 1
    for d in range(1, min(n, upper) + 1):
        if n % d == 0:
            best = d
    return best


def _pick_tile_l(L, tile_l_max, batch):
    """Pick (TL, Lp): TL a multiple of 128 that divides Lp = round_up(L, 128)."""
    lp = _round_up(max(L, 1), 128)
    m = lp // 128
    cap = max(1, tile_l_max // 128)
    t = _largest_divisor(m, cap)
    # v7x has two TensorCores sharing the ("parallel", "parallel") grid: make
    # sure a B == 1 launch still provides >= 2 independent grid units.
    if batch == 1 and (m // t) < 2 and m >= 2:
        t = _largest_divisor(m, m // 2)
    return 128 * t, lp


def _conv_tokenizer(x, weight, bias, *, tile_l, lane_dense):
    B, C_in, L = x.shape
    E = weight.shape[0]
    TL, Lp = _pick_tile_l(L, tile_l, B)
    n_tiles = Lp // TL

    # Lane-dense grouping: pack `group` consecutive positions into 128 lanes.
    group = (128 // E) if (0 < E < 128 and 128 % E == 0) else 1
    use_dense = bool(lane_dense) and group > 1 and (TL // group) % 8 == 0

    # One pad pass builds both the +/-1 "same"-padding halo and (if needed) the
    # 128-alignment padding of L; padded tail positions are sliced off below.
    x_pad = jnp.pad(x, ((0, 0), (0, 0), (1, 1 + (Lp - L))))   # (B, C_in, Lp+2)
    w_taps = jnp.transpose(weight, (2, 1, 0))                  # (3, C_in, E), tiny

    if use_dense:
        kernel = functools.partial(_kernel_dense, tile_l=TL, n_tiles=n_tiles,
                                   group=group)
        w_arg = w_taps.reshape(3 * C_in, E)                    # row = k*C_in + c
        b_arg = jnp.tile(bias, group).reshape(1, group * E)    # lane-dense bias
        out_shape = jax.ShapeDtypeStruct((B, Lp // group, group * E), x.dtype)
        w_spec = pl.BlockSpec((3 * C_in, E), lambda b, j: (0, 0))
        b_spec = pl.BlockSpec((1, group * E), lambda b, j: (0, 0))
        o_spec = pl.BlockSpec((1, TL // group, group * E), lambda b, j: (b, j, 0))
        out_blk_vmem = (TL // group) * max(group * E, 128) * 4
    else:
        kernel = functools.partial(_kernel_plain, tile_l=TL, n_tiles=n_tiles)
        w_arg = w_taps
        b_arg = bias.reshape(1, E)
        out_shape = jax.ShapeDtypeStruct((B, Lp, E), x.dtype)
        w_spec = pl.BlockSpec((3, C_in, E), lambda b, j: (0, 0, 0))
        b_spec = pl.BlockSpec((1, E), lambda b, j: (0, 0))
        o_spec = pl.BlockSpec((1, TL, E), lambda b, j: (b, j, 0))
        out_blk_vmem = TL * max(E, 128) * 4        # E < 128 is lane-padded in VMEM

    # VMEM budget: double-buffered resident row + double-buffered output tile.
    # Cap at 64 MiB so the request stays within v7x's physical VMEM (v5e/v6e
    # have 128 MiB and could go higher for very long L).
    x_row_vmem = _round_up(C_in, 8) * _round_up(Lp + 2, 128) * 4
    need = 2 * x_row_vmem + 2 * out_blk_vmem + (1 << 20)
    vmem_limit = int(max(32 << 20, min(64 << 20, 2 * need)))

    out = pl.pallas_call(
        kernel,
        out_shape=out_shape,
        grid=(B, n_tiles),            # b outer, L-tiles inner: x row stays resident
        in_specs=[
            pl.BlockSpec((1, C_in, Lp + 2), lambda b, j: (b, 0, 0)),
            w_spec,
            b_spec,
        ],
        out_specs=o_spec,
        compiler_params=pltpu.CompilerParams(
            dimension_semantics=("parallel", "parallel"),
            vmem_limit_bytes=vmem_limit,
        ),
    )(x_pad, w_arg, b_arg)

    if use_dense:
        out = out.reshape(B, Lp, E)   # free: contiguous row-major regrouping
    return out[:, :L, :] if Lp != L else out


def conv_tokenizer(x, weight, bias, *, tile_l=1024, lane_dense=None):
    """ConvTokenizer.forward (norm_layer=None): Conv1d(k=3, s=1, p=1) + permute(0,2,1).

    x:      (B, C_in, L) float32, native PyTorch NCL layout
    weight: (E, C_in, 3) Conv1d weight
    bias:   (E,)
    returns (B, L, E)
    """
    if lane_dense is None:
        try:
            return _conv_tokenizer(x, weight, bias, tile_l=tile_l, lane_dense=True)
        except Exception:
            # This toolchain's Mosaic rejected the lane-dense variant's
            # concat/reshape lowering: use the conservative (masked-store) one.
            return _conv_tokenizer(x, weight, bias, tile_l=tile_l, lane_dense=False)
    return _conv_tokenizer(x, weight, bias, tile_l=tile_l, lane_dense=lane_dense)


def _reference(x, weight, bias):
    # Pure-JAX reference of nn.Conv1d(k=3, s=1, p=1) followed by permute(0, 2, 1).
    B, C_in, L = x.shape
    xp = jnp.pad(x, ((0, 0), (0, 0), (1, 1)))
    y = bias[None, :, None]
    for k in range(3):
        y = y + jnp.einsum('bcl,oc->bol', xp[:, :, k:k + L], weight[:, :, k])
    return jnp.transpose(y, (0, 2, 1))


if __name__ == "__main__":
    in_chans, embed_dim = 3, 32

    key = jax.random.PRNGKey(0)
    kw, kb, kx1, kx2, kx3 = jax.random.split(key, 5)

    # Deterministic synthetic parameters (Conv1d weight layout: (out, in, kernel)).
    weight = jax.random.normal(kw, (embed_dim, in_chans, 3), dtype=jnp.float32) * 0.1
    bias = jax.random.normal(kb, (embed_dim,), dtype=jnp.float32) * 0.01

    def check(x, **kwargs):
        out = jax.block_until_ready(conv_tokenizer(x, weight, bias, **kwargs))
        ref = _reference(x, weight, bias)
        assert out.shape == ref.shape, (out.shape, ref.shape)
        assert jnp.allclose(out, ref, atol=2e-4, rtol=1e-3), \
            f"mismatch vs reference for x.shape={x.shape}, {kwargs}"

    # Canonical small shape (module defaults): one 128-wide tile.
    x1 = jax.random.normal(kx1, (2, in_chans, 16), dtype=jnp.float32)
    check(x1)

    # Multi-tile path (TL=128, 2 tiles): exercises the cross-tile halo.
    x2 = jax.random.normal(kx2, (2, in_chans, 256), dtype=jnp.float32)
    check(x2, tile_l=128)

    # Ragged L with B=1: exercises 128-alignment padding + the >=2-tile rule.
    x3 = jax.random.normal(kx3, (1, in_chans, 300), dtype=jnp.float32)
    check(x3)

    # The conservative (masked-store) fallback variant is also correct.
    check(x1, lane_dense=False)

    # norm_layer is None in the default ConvTokenizer, so no norm is applied.
    print("KERNEL_OK")
</pallas_src>

<mosaic_0001>
module attributes {stable_mosaic.version = 11 : i64} {
  func.func @_kernel_dense(%arg0: i32, %arg1: i32, %arg2: memref<1x3x130xf32, #tpu.memory_space<vmem>>, %arg3: memref<9x32xf32, #tpu.memory_space<vmem>>, %arg4: memref<1x128xf32, #tpu.memory_space<vmem>>, %arg5: memref<1x32x128xf32, #tpu.memory_space<vmem>>) attributes {dimension_semantics = [#tpu.dimension_semantics<parallel>, #tpu.dimension_semantics<parallel>], iteration_bounds = array<i64: 2, 1>, scalar_prefetch = 0 : i64, scratch_operands = 0 : i64, tpu.core_type = #tpu.core_type<tc>, window_params = [{transform_indices = @transform_0, window_bounds = array<i64: 1, 3, 130>}, {pipeline_mode = #tpu.pipeline_mode<synchronous>, transform_indices = @transform_1, window_bounds = array<i64: 9, 32>}, {pipeline_mode = #tpu.pipeline_mode<synchronous>, transform_indices = @transform_2, window_bounds = array<i64: 1, 128>}, {transform_indices = @transform_3, window_bounds = array<i64: 1, 32, 128>}]} {
    %c0 = arith.constant 0 : index
    %c0_0 = arith.constant 0 : index
    %c0_1 = arith.constant 0 : index
    %0 = vector.load %arg2[%c0, %c0_0, %c0_1] : memref<1x3x130xf32, #tpu.memory_space<vmem>>, vector<1x3x130xf32>
    %1 = vector.shape_cast %0 : vector<1x3x130xf32> to vector<3x130xf32>
    %2 = vector.extract_strided_slice %1 {offsets = [0, 0], sizes = [3, 128], strides = [1, 1]} : vector<3x130xf32> to vector<3x128xf32>
    %3 = vector.extract_strided_slice %1 {offsets = [0, 1], sizes = [3, 128], strides = [1, 1]} : vector<3x130xf32> to vector<3x128xf32>
    %4 = vector.extract_strided_slice %1 {offsets = [0, 2], sizes = [3, 128], strides = [1, 1]} : vector<3x130xf32> to vector<3x128xf32>
    %5 = tpu.concatenate %2, %3, %4 in 0 : vector<3x128xf32>, vector<3x128xf32>, vector<3x128xf32> -> vector<9x128xf32>
    %c0_2 = arith.constant 0 : index
    %c0_3 = arith.constant 0 : index
    %6 = vector.load %arg3[%c0_2, %c0_3] : memref<9x32xf32, #tpu.memory_space<vmem>>, vector<9x32xf32>
    %cst = arith.constant dense<0.000000e+00> : vector<128x32xf32>
    %7 = tpu.matmul %5, %6, %cst {dimension_numbers = #tpu.dot_dimension_numbers<[0], [0], [1], [1], [0, 1, 1, 1], [], []>} : vector<9x128xf32>, vector<9x32xf32>, vector<128x32xf32> -> vector<128x32xf32>
    %8 = vector.shape_cast %7 : vector<128x32xf32> to vector<32x128xf32>
    %c0_4 = arith.constant 0 : index
    %c0_5 = arith.constant 0 : index
    %9 = vector.load %arg4[%c0_4, %c0_5] : memref<1x128xf32, #tpu.memory_space<vmem>>, vector<1x128xf32>
    %10 = vector.broadcast %9 : vector<1x128xf32> to vector<32x128xf32>
    %11 = arith.addf %8, %10 : vector<32x128xf32>
    %c0_6 = arith.constant 0 : index
    %c0_7 = arith.constant 0 : index
    %c0_8 = arith.constant 0 : index
    %12 = vector.load %arg5[%c0_6, %c0_7, %c0_8] : memref<1x32x128xf32, #tpu.memory_space<vmem>>, vector<1x32x128xf32>
    %13 = vector.shape_cast %12 : vector<1x32x128xf32> to vector<32x128xf32>
    %14 = vector.shape_cast %11 : vector<32x128xf32> to vector<1x32x128xf32>
    tpu.vector_store %arg5[%c0_6, %c0_7, %c0_8], %14 {strides = array<i32>} : memref<1x32x128xf32, #tpu.memory_space<vmem>>, vector<1x32x128xf32>,
    return
  }
  func.func @transform_0(%arg0: i32, %arg1: i32) -> (i32, i32, i32) {
    %c0_i32 = arith.constant 0 : i32
    %c0_i32_0 = arith.constant 0 : i32
    %c0_i32_1 = arith.constant 0 : i32
    return %arg0, %c0_i32, %c0_i32_0 : i32, i32, i32
  }
  func.func @transform_1(%arg0: i32, %arg1: i32) -> (i32, i32) {
    %c0_i32 = arith.constant 0 : i32
    %c0_i32_0 = arith.constant 0 : i32
    %c0_i32_1 = arith.constant 0 : i32
    return %c0_i32, %c0_i32_0 : i32, i32
  }
  func.func @transform_2(%arg0: i32, %arg1: i32) -> (i32, i32) {
    %c0_i32 = arith.constant 0 : i32
    %c0_i32_0 = arith.constant 0 : i32
    %c0_i32_1 = arith.constant 0 : i32
    return %c0_i32, %c0_i32_0 : i32, i32
  }
  func.func @transform_3(%arg0: i32, %arg1: i32) -> (i32, i32, i32) {
    %c0_i32 = arith.constant 0 : i32
    %c0_i32_0 = arith.constant 0 : i32
    return %arg0, %arg1, %c0_i32 : i32, i32, i32
  }
}

module attributes {stable_mosaic.version = 11 : i64} {
  func.func @_kernel_plain(%arg0: i32, %arg1: i32, %arg2: memref<1x3x130xf32, #tpu.memory_space<vmem>>, %arg3: memref<3x3x32xf32, #tpu.memory_space<vmem>>, %arg4: memref<1x32xf32, #tpu.memory_space<vmem>>, %arg5: memref<1x128x32xf32, #tpu.memory_space<vmem>>) attributes {dimension_semantics = [#tpu.dimension_semantics<parallel>, #tpu.dimension_semantics<parallel>], iteration_bounds = array<i64: 2, 1>, scalar_prefetch = 0 : i64, scratch_operands = 0 : i64, tpu.core_type = #tpu.core_type<tc>, window_params = [{transform_indices = @transform_0, window_bounds = array<i64: 1, 3, 130>}, {pipeline_mode = #tpu.pipeline_mode<synchronous>, transform_indices = @transform_1, window_bounds = array<i64: 3, 3, 32>}, {pipeline_mode = #tpu.pipeline_mode<synchronous>, transform_indices = @transform_2, window_bounds = array<i64: 1, 32>}, {transform_indices = @transform_3, window_bounds = array<i64: 1, 128, 32>}]} {
    %c0 = arith.constant 0 : index
    %c0_0 = arith.constant 0 : index
    %c0_1 = arith.constant 0 : index
    %0 = vector.load %arg2[%c0, %c0_0, %c0_1] : memref<1x3x130xf32, #tpu.memory_space<vmem>>, vector<1x3x130xf32>
    %1 = vector.shape_cast %0 : vector<1x3x130xf32> to vector<3x130xf32>
    %2 = vector.extract_strided_slice %1 {offsets = [0, 0], sizes = [3, 128], strides = [1, 1]} : vector<3x130xf32> to vector<3x128xf32>
    %3 = vector.extract_strided_slice %1 {offsets = [0, 1], sizes = [3, 128], strides = [1, 1]} : vector<3x130xf32> to vector<3x128xf32>
    %4 = vector.extract_strided_slice %1 {offsets = [0, 2], sizes = [3, 128], strides = [1, 1]} : vector<3x130xf32> to vector<3x128xf32>
    %c0_2 = arith.constant 0 : index
    %c0_3 = arith.constant 0 : index
    %c0_4 = arith.constant 0 : index
    %5 = vector.load %arg3[%c0_2, %c0_3, %c0_4] : memref<3x3x32xf32, #tpu.memory_space<vmem>>, vector<1x3x32xf32>
    %6 = vector.shape_cast %5 : vector<1x3x32xf32> to vector<3x32xf32>
    %cst = arith.constant dense<0.000000e+00> : vector<128x32xf32>
    %7 = tpu.matmul %2, %6, %cst {dimension_numbers = #tpu.dot_dimension_numbers<[0], [0], [1], [1], [0, 1, 1, 1], [], []>} : vector<3x128xf32>, vector<3x32xf32>, vector<128x32xf32> -> vector<128x32xf32>
    %c1 = arith.constant 1 : index
    %c0_5 = arith.constant 0 : index
    %c0_6 = arith.constant 0 : index
    %8 = vector.load %arg3[%c1, %c0_5, %c0_6] : memref<3x3x32xf32, #tpu.memory_space<vmem>>, vector<1x3x32xf32>
    %9 = vector.shape_cast %8 : vector<1x3x32xf32> to vector<3x32xf32>
    %cst_7 = arith.constant dense<0.000000e+00> : vector<128x32xf32>
    %10 = tpu.matmul %3, %9, %cst_7 {dimension_numbers = #tpu.dot_dimension_numbers<[0], [0], [1], [1], [0, 1, 1, 1], [], []>} : vector<3x128xf32>, vector<3x32xf32>, vector<128x32xf32> -> vector<128x32xf32>
    %11 = arith.addf %7, %10 : vector<128x32xf32>
    %c2 = arith.constant 2 : index
    %c0_8 = arith.constant 0 : index
    %c0_9 = arith.constant 0 : index
    %12 = vector.load %arg3[%c2, %c0_8, %c0_9] : memref<3x3x32xf32, #tpu.memory_space<vmem>>, vector<1x3x32xf32>
    %13 = vector.shape_cast %12 : vector<1x3x32xf32> to vector<3x32xf32>
    %cst_10 = arith.constant dense<0.000000e+00> : vector<128x32xf32>
    %14 = tpu.matmul %4, %13, %cst_10 {dimension_numbers = #tpu.dot_dimension_numbers<[0], [0], [1], [1], [0, 1, 1, 1], [], []>} : vector<3x128xf32>, vector<3x32xf32>, vector<128x32xf32> -> vector<128x32xf32>
    %15 = arith.addf %11, %14 : vector<128x32xf32>
    %c0_11 = arith.constant 0 : index
    %c0_12 = arith.constant 0 : index
    %16 = vector.load %arg4[%c0_11, %c0_12] : memref<1x32xf32, #tpu.memory_space<vmem>>, vector<1x32xf32>
    %17 = vector.broadcast %16 : vector<1x32xf32> to vector<128x32xf32>
    %18 = arith.addf %15, %17 : vector<128x32xf32>
    %c0_13 = arith.constant 0 : index
    %c0_14 = arith.constant 0 : index
    %c0_15 = arith.constant 0 : index
    %19 = vector.load %arg5[%c0_13, %c0_14, %c0_15] : memref<1x128x32xf32, #tpu.memory_space<vmem>>, vector<1x128x32xf32>
    %20 = vector.shape_cast %19 : vector<1x128x32xf32> to vector<128x32xf32>
    %21 = vector.shape_cast %18 : vector<128x32xf32> to vector<1x128x32xf32>
    tpu.vector_store %arg5[%c0_13, %c0_14, %c0_15], %21 {strides = array<i32>} : memref<1x128x32xf32, #tpu.memory_space<vmem>>, vector<1x128x32xf32>,
    return
  }
  func.func @transform_0(%arg0: i32, %arg1: i32) -> (i32, i32, i32) {
    %c0_i32 = arith.constant 0 : i32
    %c0_i32_0 = arith.constant 0 : i32
    %c0_i32_1 = arith.constant 0 : i32
    return %arg0, %c0_i32, %c0_i32_0 : i32, i32, i32
  }
  func.func @transform_1(%arg0: i32, %arg1: i32) -> (i32, i32, i32) {
    %c0_i32 = arith.constant 0 : i32
    %c0_i32_0 = arith.constant 0 : i32
    %c0_i32_1 = arith.constant 0 : i32
    %c0_i32_2 = arith.constant 0 : i32
    return %c0_i32, %c0_i32_0, %c0_i32_1 : i32, i32, i32
  }
  func.func @transform_2(%arg0: i32, %arg1: i32) -> (i32, i32) {
    %c0_i32 = arith.constant 0 : i32
    %c0_i32_0 = arith.constant 0 : i32
    %c0_i32_1 = arith.constant 0 : i32
    return %c0_i32, %c0_i32_0 : i32, i32
  }
  func.func @transform_3(%arg0: i32, %arg1: i32) -> (i32, i32, i32) {
    %c0_i32 = arith.constant 0 : i32
    %c0_i32_0 = arith.constant 0 : i32
    return %arg0, %arg1, %c0_i32 : i32, i32, i32
  }
}

</mosaic_0001>

<llo_original>
// kernel: tpu_custom_call.1
$region0: #{tpu_custom_call.1}
  #allocation0 [shape = 'u32[]', space=smem, size = 0x4, offset = 0x4, fixed_abs, tag = 'smem constant byte address 0x4 - core index']
  #allocation1 [shape = 'u32[144,128]{1,0:T(1,128)}', space=vmem, size = 0x12000, scoped, tag = 'internal scratch']
  %s0 = inlined_call_operand.vmem [shape: f32[2,3,130], index: 0, kind: input, shape index: {}]
  %s1 = inlined_call_operand.vmem [shape: f32[3,3,32], index: 1, kind: input, shape index: {}]
  %s2 = inlined_call_operand.vmem [shape: f32[1,32], index: 2, kind: input, shape index: {}]
  %s3 = inlined_call_operand.vmem [shape: f32[2,128,32], index: 3, kind: output, shape index: {}]
  %s4 = sld [smem:[#allocation0]]
  $region45: #{tpu_custom_call.1} parent=0
    _
  %s6 = ssub.s32 1, %s4
  %s7 = scalar_select 0, %s6, %s4
  loop: start=0, step=1, limit=4
  $region2: #{tpu_custom_call.1} parent=0 // loop_pre_header
    _
  $region3: #{tpu_custom_call.1} parent=0 // loop_header
    %s9 = sphi 0, %s13
    %p10 = scmp.ge.s32.totalorder %s9, 4
    %s16 = sphi 0, %s28
    %s17 = sphi 0, %s24
    %s18 = sphi 0, %s16
    %s19 = sphi 0, %s17
    %s20 = sphi 0, %s18
    %s21 = sphi 0, %s19
    %s31 = sphi 0, %s33
    %s34 = sphi 0, %s31
    %s35 = sphi 0, %s34
    %s51 = sphi 0, %s35
    %s55 = sphi 0, %s55
    %s57 = sphi 0, %s55
    %s58 = sphi 0, %s57
    %s72 = sphi 0, %s58
    %s76 = sphi 0, %s76
    %s78 = sphi 0, %s76
    %s79 = sphi 0, %s78
    %s93 = sphi 0, %s79
    %s101 = sphi 0, %s103
    %s104 = sphi 0, %s101
    %s105 = sphi 0, %s104
    %s121 = sphi 0, %s105
  $region4: #{tpu_custom_call.1} parent=0 // loop_header_branch
    %12 = sbr.rel (%p10) target = $region8
  $region5: #{tpu_custom_call.1} parent=0 // loop_body
    %s14 = ssub.s32 %s9, 1
    %s15 = ssub.s32 %s9, 2
    %s22 = sadd.s32 1, %s17
    %p23 = scmp.ge.s32.totalorder %s22, 1
    %s24 = scalar_select %p23, 0, %s22
    %s25 = sadd.s32 1, %s16
    %s26 = scalar_select %p23, %s25, %s16
    %p27 = scmp.ge.s32.totalorder %s26, 2
    %s28 = scalar_select %p27, 0, %s26
    %s29 = ssub.s32 %s16, %s28
    %p30 = scmp.eq.s32.totalorder %s29, 0
    %s32 = sadd.s32 %s31, 1
    %s33 = scalar_select %p30, %s31, %s32
    %p36 = pneg %p30
    %p37 = scmp.eq.s32.totalorder %s9, 1
    %p38 = por %p36, %p37
    %p39 = scmp.ne.s32.totalorder %s31, %s34
    %p40 = scmp.eq.s32.totalorder %s9, 0
    %p41 = por %p39, %p40
    %p42 = scmp.ne.s32.totalorder %s31, %s34
    %p43 = scmp.eq.s32.totalorder %s14, 1
    %p44 = por %p42, %p43
    %p45 = scmp.ne.s32.totalorder %s34, %s35
    %p46 = scmp.eq.s32.totalorder %s14, 0
    %p47 = por %p45, %p46
    %p48 = scmp.ne.s32.totalorder %s34, %s35
    %p49 = scmp.eq.s32.totalorder %s15, 1
    %p50 = por %p48, %p49
    %p52 = scmp.ne.s32.totalorder %s35, %s51
    %p53 = scmp.eq.s32.totalorder %s15, 0
    %p54 = por %p52, %p53
    %s56 = sadd.s32 %s55, 1
    %p59 = scmp.eq.s32.totalorder %s9, 1
    %p60 = scmp.ne.s32.totalorder %s55, %s57
    %p61 = scmp.eq.s32.totalorder %s9, 0
    %p62 = por %p60, %p61
    %p63 = scmp.ne.s32.totalorder %s55, %s57
    %p64 = scmp.eq.s32.totalorder %s14, 1
    %p65 = por %p63, %p64
    %p66 = scmp.ne.s32.totalorder %s57, %s58
    %p67 = scmp.eq.s32.totalorder %s14, 0
    %p68 = por %p66, %p67
    %p69 = scmp.ne.s32.totalorder %s57, %s58
    %p70 = scmp.eq.s32.totalorder %s15, 1
    %p71 = por %p69, %p70
    %p73 = scmp.ne.s32.totalorder %s58, %s72
    %p74 = scmp.eq.s32.totalorder %s15, 0
    %p75 = por %p73, %p74
    %s77 = sadd.s32 %s76, 1
    %p80 = scmp.eq.s32.totalorder %s9, 1
    %p81 = scmp.ne.s32.totalorder %s76, %s78
    %p82 = scmp.eq.s32.totalorder %s9, 0
    %p83 = por %p81, %p82
    %p84 = scmp.ne.s32.totalorder %s76, %s78
    %p85 = scmp.eq.s32.totalorder %s14, 1
    %p86 = por %p84, %p85
    %p87 = scmp.ne.s32.totalorder %s78, %s79
    %p88 = scmp.eq.s32.totalorder %s14, 0
    %p89 = por %p87, %p88
    %p90 = scmp.ne.s32.totalorder %s78, %s79
    %p91 = scmp.eq.s32.totalorder %s15, 1
    %p92 = por %p90, %p91
    %p94 = scmp.ne.s32.totalorder %s79, %s93
    %p95 = scmp.eq.s32.totalorder %s15, 0
    %p96 = por %p94, %p95
    %s97 = ssub.s32 %s16, %s28
    %s98 = ssub.s32 %s17, %s24
    %s99 = sor.u32 %s97, %s98
    %p100 = scmp.eq.s32.totalorder %s99, 0
    %s102 = sadd.s32 %s101, 1
    %s103 = scalar_select %p100, %s101, %s102
    %p106 = pneg %p100
    %p107 = scmp.eq.s32.totalorder %s9, 1
    %p108 = por %p106, %p107
    %p109 = scmp.ne.s32.totalorder %s101, %s104
    %p110 = scmp.eq.s32.totalorder %s9, 0
    %p111 = por %p109, %p110
    %p112 = scmp.ne.s32.totalorder %s101, %s104
    %p113 = scmp.eq.s32.totalorder %s14, 1
    %p114 = por %p112, %p113
    %p115 = scmp.ne.s32.totalorder %s104, %s105
    %p116 = scmp.eq.s32.totalorder %s14, 0
    %p117 = por %p115, %p116
    %p118 = scmp.ne.s32.totalorder %s104, %s105
    %p119 = scmp.eq.s32.totalorder %s15, 1
    %p120 = por %p118, %p119
    %p122 = scmp.ne.s32.totalorder %s105, %s121
    %p123 = scmp.eq.s32.totalorder %s15, 0
    %p124 = por %p122, %p123
    %p125 = scmp.le.s32.totalorder 1, %s9
    %p126 = scmp.lt.s32.totalorder %s9, 3
    %p127 = pnand %p125, %p126
    %p128 = pneg %p127
    // Predicated region
    $region9: #{tpu_custom_call.1} parent=5 // pred_check
      _
    $region10: #{tpu_custom_call.1} parent=5 // pred_check_branch
      %130 = sbr.rel (%p127) target = $region12
    $region11: #{tpu_custom_call.1} parent=5 // pred_region
      %s131 = ssub.s32 %s9, 1
      // Predicated region
      $region13: #{tpu_custom_call.1} parent=11 // pred_check
        %p132 = pneg %p68
      $region14: #{tpu_custom_call.1} parent=11 // pred_check_branch
        %134 = sbr.rel (%p132) target = $region16
      $region15: #{tpu_custom_call.1} parent=11 // pred_region
        _
      $region16: #{tpu_custom_call.1} parent=11 // pred_fallthru
        _
      // Predicated region
      $region17: #{tpu_custom_call.1} parent=11 // pred_check
        %p135 = pneg %p89
      $region18: #{tpu_custom_call.1} parent=11 // pred_check_branch
        %137 = sbr.rel (%p135) target = $region20
      $region19: #{tpu_custom_call.1} parent=11 // pred_region
        _
      $region20: #{tpu_custom_call.1} parent=11 // pred_fallthru
        _
    $region12: #{tpu_custom_call.1} parent=5 // pred_fallthru
      _
    %p138 = scmp.lt.s32.totalorder %s9, 2
    // Predicated region
    $region21: #{tpu_custom_call.1} parent=5 // pred_check
      %p139 = pneg %p138
    $region22: #{tpu_custom_call.1} parent=5 // pred_check_branch
      %141 = sbr.rel (%p139) target = $region24
    $region23: #{tpu_custom_call.1} parent=5 // pred_region
      // Predicated region
      $region25: #{tpu_custom_call.1} parent=23 // pred_check
        %p142 = pneg %p41
      $region26: #{tpu_custom_call.1} parent=23 // pred_check_branch
        %144 = sbr.rel (%p142) target = $region28
      $region27: #{tpu_custom_call.1} parent=23 // pred_region
        %p145 = scmp.lt.s32.totalorder %s16, 1
        %s146 = scalar_select %p145, %s16, 1
        %s147 = smul.addr %s146, 2
        %s148 = smul.addr %s147, 4
        %s149 = scalar_lea.vmem %s0, %s148
      $region28: #{tpu_custom_call.1} parent=23 // pred_fallthru
        _
    $region24: #{tpu_custom_call.1} parent=5 // pred_fallthru
      _
    %p150 = scmp.le.s32.totalorder 1, %s9
    %p151 = scmp.lt.s32.totalorder %s9, 3
    %p152 = pnand %p150, %p151
    %p153 = pneg %p152
    // Predicated region
    $region29: #{tpu_custom_call.1} parent=5 // pred_check
      _
    $region30: #{tpu_custom_call.1} parent=5 // pred_check_branch
      %155 = sbr.rel (%p152) target = $region32
    $region31: #{tpu_custom_call.1} parent=5 // pred_region
      %s156 = ssub.s32 %s9, 1
      %p157 = scmp.lt.s32.totalorder %s18, 1
      %s158 = scalar_select %p157, %s18, 1
      %s159 = smul.addr %s158, 2
      %s160 = smul.addr %s159, 4
      %s161 = scalar_lea.vmem %s0, %s160
      %p162 = pneg %p47
      %p163 = pneg %p44
      %p164 = pneg %p68
      %p165 = pneg %p65
      %p166 = pneg %p89
      %p167 = pneg %p86
      %p168 = pneg %p117
      %p169 = pneg %p114
      %s170 = smul.u32 16, %s19
      %p171 = scmp.lt.s32.totalorder %s18, 1
      %s172 = scalar_select %p171, %s18, 1
      %p173 = scmp.lt.s32.totalorder %s170, 15
      %s174 = scalar_select %p173, %s170, 15
      %s175 = smul.addr %s172, 16
      %s176 = sadd.s32 %s174, %s175
      %s177 = smul.addr %s176, 8
      %s178 = scalar_lea.vmem %s3, %s177
      %p179 = scmp.lt.s32.totalorder %s18, 1
      %s180 = scalar_select %p179, %s18, 1
      %s181 = smul.addr %s180, 2
      %s182 = smul.addr %s181, 4
      %s183 = scalar_lea.vmem %s0, %s182
      %s184 = smul.u32 16, %s19
      %p185 = scmp.lt.s32.totalorder %s18, 1
      %s186 = scalar_select %p185, %s18, 1
      %p187 = scmp.lt.s32.totalorder %s184, 15
      %s188 = scalar_select %p187, %s184, 15
      %s189 = smul.addr %s186, 16
      %s190 = sadd.s32 %s188, %s189
      %s191 = smul.addr %s190, 8
      %s192 = scalar_lea.vmem %s3, %s191
      %s193 = smul.u32 16, %s19
      %v194 = vld [vmem:[%s183] sm:$0x77]
      %v195 = vld [vmem:[%s1] sm:$0x7]
      %s196 = scalar_lea.vmem %s1, 4
      %v197 = vld [vmem:[%s196] sm:$0x7]
      %v199 = vcombine.high %v194, %v194
      %200 = vrot.lane.b32.xlu0 %v194, 127
      %v201 = vpop.permute.xlu0 %200
      %202 = vrot.lane.b32.xlu0 %v199, 127
      %v203 = vpop.permute.xlu0 %202
      %vm204 = vcmask 1039360
      %v205 = vsel %vm204, %v201, %v203
      %207 = vxpose.xlu0.b32.start [1/16] %v205, 128
      %208 = vxpose.xlu0.b32.cont [2/16] 0.0, 128
      %209 = vxpose.xlu0.b32.cont [3/16] 0.0, 128
      %210 = vxpose.xlu0.b32.cont [4/16] 0.0, 128
      %211 = vxpose.xlu0.b32.cont [5/16] 0.0, 128
      %212 = vxpose.xlu0.b32.cont [6/16] 0.0, 128
      %213 = vxpose.xlu0.b32.cont [7/16] 0.0, 128
      %214 = vxpose.xlu0.b32.cont [8/16] 0.0, 128
      %215 = vxpose.xlu0.b32.cont [9/16] 0.0, 128
      %216 = vxpose.xlu0.b32.cont [10/16] 0.0, 128
      %217 = vxpose.xlu0.b32.cont [11/16] 0.0, 128
      %218 = vxpose.xlu0.b32.cont [12/16] 0.0, 128
      %219 = vxpose.xlu0.b32.cont [13/16] 0.0, 128
      %220 = vxpose.xlu0.b32.cont [14/16] 0.0, 128
      %221 = vxpose.xlu0.b32.cont [15/16] 0.0, 128
      %222 = vxpose.xlu0.b32.end [16/16] 0.0, 128
      %v223 = vpop.trf.xlu0
      %v224 = vpop.trf.xlu0
      %v225 = vpop.trf.xlu0
      %v226 = vpop.trf.xlu0
      %v227 = vpop.trf.xlu0
      %v228 = vpop.trf.xlu0
      %v229 = vpop.trf.xlu0
      %v230 = vpop.trf.xlu0
      %v231 = vpop.trf.xlu0
      %v232 = vpop.trf.xlu0
      %v233 = vpop.trf.xlu0
      %v234 = vpop.trf.xlu0
      %v235 = vpop.trf.xlu0
      %v236 = vpop.trf.xlu0
      %v237 = vpop.trf.xlu0
      %v238 = vpop.trf.xlu0
      %vm239 = vcmask 23552
      %v241 = vsel %vm239, %v223, 0
      %v244 = vsel %vm239, %v224, 0
      %v247 = vsel %vm239, %v225, 0
      %v250 = vsel %vm239, %v226, 0
      %v253 = vsel %vm239, %v227, 0
      %v256 = vsel %vm239, %v228, 0
      %v259 = vsel %vm239, %v229, 0
      %v262 = vsel %vm239, %v230, 0
      %v265 = vsel %vm239, %v231, 0
      %v268 = vsel %vm239, %v232, 0
      %v271 = vsel %vm239, %v233, 0
      %v274 = vsel %vm239, %v234, 0
      %v277 = vsel %vm239, %v235, 0
      %v280 = vsel %vm239, %v236, 0
      %v283 = vsel %vm239, %v237, 0
      %v286 = vsel %vm239, %v238, 0
      %vm288 = vcmask 1042432
      %v290 = vsel %vm288, %v197, 0
      %292 = vmatprep.subr.mxu0 0.0
      %293 = vmatpush1.msra.mxu0 0.0
      %294 = vmatprep.subr.mxu0 0.0
      %295 = vmatpush1.msra.mxu0 0.0
      %296 = vmatprep.subr.mxu0 0.0
      %297 = vmatpush1.msra.mxu0 0.0
      %298 = vmatprep.subr.mxu0 0.0
      %299 = vmatpush1.msra.mxu0 0.0
      %300 = vmatprep.subr.mxu0 0.0
      %301 = vmatpush1.msra.mxu0 0.0
      %302 = vmatprep.subr.mxu0 0.0
      %303 = vmatpush1.msra.mxu0 0.0
      %304 = vmatprep.subr.mxu0 0.0
      %305 = vmatpush1.msra.mxu0 0.0
      %306 = vmatprep.subr.mxu0 0.0
      %307 = vmatpush1.msra.mxu0 0.0
      %308 = vmatprep.subr.mxu0 0.0
      %309 = vmatpush1.msra.mxu0 0.0
      %310 = vmatprep.subr.mxu0 0.0
      %311 = vmatpush1.msra.mxu0 0.0
      %312 = vmatprep.subr.mxu0 0.0
      %313 = vmatpush1.msra.mxu0 0.0
      %314 = vmatprep.subr.mxu0 0.0
      %315 = vmatpush1.msra.mxu0 0.0
      %316 = vmatprep.subr.mxu0 0.0
      %317 = vmatpush1.msra.mxu0 0.0
      %318 = vmatprep.subr.mxu0 0.0
      %319 = vmatpush1.msra.mxu0 0.0
      %320 = vmatprep.subr.mxu0 0.0
      %321 = vmatpush1.msra.mxu0 0.0
      %322 = vmatprep.subr.mxu0 0.0
      %323 = vmatpush1.msra.mxu0 %v290
      %324 = vmatprep.subr.mxu0 0.0
      %325 = vmatpush2.msra.mxu0 0.0
      %326 = vmatprep.subr.mxu0 0.0
      %327 = vmatpush2.msra.mxu0 0.0
      %328 = vmatprep.subr.mxu0 0.0
      %329 = vmatpush2.msra.mxu0 0.0
      %330 = vmatprep.subr.mxu0 0.0
      %331 = vmatpush2.msra.mxu0 0.0
      %332 = vmatprep.subr.mxu0 0.0
      %333 = vmatpush2.msra.mxu0 0.0
      %334 = vmatprep.subr.mxu0 0.0
      %335 = vmatpush2.msra.mxu0 0.0
      %336 = vmatprep.subr.mxu0 0.0
      %337 = vmatpush2.msra.mxu0 0.0
      %338 = vmatprep.subr.mxu0 0.0
      %339 = vmatpush2.msra.mxu0 0.0
      %340 = vmatprep.subr.mxu0 0.0
      %341 = vmatpush2.msra.mxu0 0.0
      %342 = vmatprep.subr.mxu0 0.0
      %343 = vmatpush2.msra.mxu0 0.0
      %344 = vmatprep.subr.mxu0 0.0
      %345 = vmatpush2.msra.mxu0 0.0
      %346 = vmatprep.subr.mxu0 0.0
      %347 = vmatpush2.msra.mxu0 0.0
      %348 = vmatprep.subr.mxu0 0.0
      %349 = vmatpush2.msra.mxu0 0.0
      %350 = vmatprep.subr.mxu0 0.0
      %351 = vmatpush2.msra.mxu0 0.0
      %352 = vmatprep.subr.mxu0 0.0
      %353 = vmatpush2.msra.mxu0 0.0
      %354 = vmatprep.subr.mxu0 0.0
      %355 = vmatpush2.msra.mxu0 0.0
      %356 = vmatprep.mubr.f32.mxu0 0.0
      %357 = vmatmul.mubr.f32.gmra.mxu0 %v241
      %v358 = vpop.f32.mrf.mxu0
      %v359 = vadd.f32 0.0, %v358
      %v360 = vpop.f32.mrf.mxu0
      %361 = vmatprep.mubr.f32.mxu0 0.0
      %362 = vmatmul.mubr.f32.gmra.mxu0 %v244
      %v363 = vpop.f32.mrf.mxu0
      %v364 = vadd.f32 0.0, %v363
      %v365 = vpop.f32.mrf.mxu0
      %366 = vmatprep.mubr.f32.mxu0 0.0
      %367 = vmatmul.mubr.f32.gmra.mxu0 %v247
      %v368 = vpop.f32.mrf.mxu0
      %v369 = vadd.f32 0.0, %v368
      %v370 = vpop.f32.mrf.mxu0
      %371 = vmatprep.mubr.f32.mxu0 0.0
      %372 = vmatmul.mubr.f32.gmra.mxu0 %v250
      %v373 = vpop.f32.mrf.mxu0
      %v374 = vadd.f32 0.0, %v373
      %v375 = vpop.f32.mrf.mxu0
      %376 = vmatprep.mubr.f32.mxu0 0.0
      %377 = vmatmul.mubr.f32.gmra.mxu0 %v253
      %v378 = vpop.f32.mrf.mxu0
      %v379 = vadd.f32 0.0, %v378
      %v380 = vpop.f32.mrf.mxu0
      %381 = vmatprep.mubr.f32.mxu0 0.0
      %382 = vmatmul.mubr.f32.gmra.mxu0 %v256
      %v383 = vpop.f32.mrf.mxu0
      %v384 = vadd.f32 0.0, %v383
      %v385 = vpop.f32.mrf.mxu0
      %386 = vmatprep.mubr.f32.mxu0 0.0
      %387 = vmatmul.mubr.f32.gmra.mxu0 %v259
      %v388 = vpop.f32.mrf.mxu0
      %v389 = vadd.f32 0.0, %v388
      %v390 = vpop.f32.mrf.mxu0
      %391 = vmatprep.mubr.f32.mxu0 0.0
      %392 = vmatmul.mubr.f32.gmra.mxu0 %v262
      %v393 = vpop.f32.mrf.mxu0
      %v394 = vadd.f32 0.0, %v393
      %v395 = vpop.f32.mrf.mxu0
      %396 = vmatprep.mubr.f32.mxu0 0.0
      %397 = vmatmul.mubr.f32.gmra.mxu0 %v265
      %v398 = vpop.f32.mrf.mxu0
      %v399 = vadd.f32 0.0, %v398
      %v400 = vpop.f32.mrf.mxu0
      %401 = vmatprep.mubr.f32.mxu0 0.0
      %402 = vmatmul.mubr.f32.gmra.mxu0 %v268
      %v403 = vpop.f32.mrf.mxu0
      %v404 = vadd.f32 0.0, %v403
      %v405 = vpop.f32.mrf.mxu0
      %406 = vmatprep.mubr.f32.mxu0 0.0
      %407 = vmatmul.mubr.f32.gmra.mxu0 %v271
      %v408 = vpop.f32.mrf.mxu0
      %v409 = vadd.f32 0.0, %v408
      %v410 = vpop.f32.mrf.mxu0
      %411 = vmatprep.mubr.f32.mxu0 0.0
      %412 = vmatmul.mubr.f32.gmra.mxu0 %v274
      %v413 = vpop.f32.mrf.mxu0
      %v414 = vadd.f32 0.0, %v413
      %v415 = vpop.f32.mrf.mxu0
      %416 = vmatprep.mubr.f32.mxu0 0.0
      %417 = vmatmul.mubr.f32.gmra.mxu0 %v277
      %v418 = vpop.f32.mrf.mxu0
      %v419 = vadd.f32 0.0, %v418
      %v420 = vpop.f32.mrf.mxu0
      %421 = vmatprep.mubr.f32.mxu0 0.0
      %422 = vmatmul.mubr.f32.gmra.mxu0 %v280
      %v423 = vpop.f32.mrf.mxu0
      %v424 = vadd.f32 0.0, %v423
      %v425 = vpop.f32.mrf.mxu0
      %426 = vmatprep.mubr.f32.mxu0 0.0
      %427 = vmatmul.mubr.f32.gmra.mxu0 %v283
      %v428 = vpop.f32.mrf.mxu0
      %v429 = vadd.f32 0.0, %v428
      %v430 = vpop.f32.mrf.mxu0
      %431 = vmatprep.mubr.f32.mxu0 0.0
      %432 = vmatmul.mubr.f32.gmra.mxu0 %v286
      %v433 = vpop.f32.mrf.mxu0
      %v434 = vadd.f32 0.0, %v433
      %v435 = vpop.f32.mrf.mxu0
      %436 = vdwg.mxu0
      %437 = vxpose.xlu0.b32.start [1/16] %v194, 128
      %438 = vxpose.xlu0.b32.cont [2/16] 0.0, 128
      %439 = vxpose.xlu0.b32.cont [3/16] 0.0, 128
      %440 = vxpose.xlu0.b32.cont [4/16] 0.0, 128
      %441 = vxpose.xlu0.b32.cont [5/16] 0.0, 128
      %442 = vxpose.xlu0.b32.cont [6/16] 0.0, 128
      %443 = vxpose.xlu0.b32.cont [7/16] 0.0, 128
      %444 = vxpose.xlu0.b32.cont [8/16] 0.0, 128
      %445 = vxpose.xlu0.b32.cont [9/16] 0.0, 128
      %446 = vxpose.xlu0.b32.cont [10/16] 0.0, 128
      %447 = vxpose.xlu0.b32.cont [11/16] 0.0, 128
      %448 = vxpose.xlu0.b32.cont [12/16] 0.0, 128
      %449 = vxpose.xlu0.b32.cont [13/16] 0.0, 128
      %450 = vxpose.xlu0.b32.cont [14/16] 0.0, 128
      %451 = vxpose.xlu0.b32.cont [15/16] 0.0, 128
      %452 = vxpose.xlu0.b32.end [16/16] 0.0, 128
      %v453 = vpop.trf.xlu0
      %v454 = vpop.trf.xlu0
      %v455 = vpop.trf.xlu0
      %v456 = vpop.trf.xlu0
      %v457 = vpop.trf.xlu0
      %v458 = vpop.trf.xlu0
      %v459 = vpop.trf.xlu0
      %v460 = vpop.trf.xlu0
      %v461 = vpop.trf.xlu0
      %v462 = vpop.trf.xlu0
      %v463 = vpop.trf.xlu0
      %v464 = vpop.trf.xlu0
      %v465 = vpop.trf.xlu0
      %v466 = vpop.trf.xlu0
      %v467 = vpop.trf.xlu0
      %v468 = vpop.trf.xlu0
      %v470 = vsel %vm239, %v453, 0
      %v473 = vsel %vm239, %v454, 0
      %v476 = vsel %vm239, %v455, 0
      %v479 = vsel %vm239, %v456, 0
      %v482 = vsel %vm239, %v457, 0
      %v485 = vsel %vm239, %v458, 0
      %v488 = vsel %vm239, %v459, 0
      %v491 = vsel %vm239, %v460, 0
      %v494 = vsel %vm239, %v461, 0
      %v497 = vsel %vm239, %v462, 0
      %v500 = vsel %vm239, %v463, 0
      %v503 = vsel %vm239, %v464, 0
      %v506 = vsel %vm239, %v465, 0
      %v509 = vsel %vm239, %v466, 0
      %v512 = vsel %vm239, %v467, 0
      %v515 = vsel %vm239, %v468, 0
      %v518 = vsel %vm288, %v195, 0
      %520 = vmatprep.subr.mxu0 0.0
      %521 = vmatpush1.msra.mxu0 0.0
      %522 = vmatprep.subr.mxu0 0.0
      %523 = vmatpush1.msra.mxu0 0.0
      %524 = vmatprep.subr.mxu0 0.0
      %525 = vmatpush1.msra.mxu0 0.0
      %526 = vmatprep.subr.mxu0 0.0
      %527 = vmatpush1.msra.mxu0 0.0
      %528 = vmatprep.subr.mxu0 0.0
      %529 = vmatpush1.msra.mxu0 0.0
      %530 = vmatprep.subr.mxu0 0.0
      %531 = vmatpush1.msra.mxu0 0.0
      %532 = vmatprep.subr.mxu0 0.0
      %533 = vmatpush1.msra.mxu0 0.0
      %534 = vmatprep.subr.mxu0 0.0
      %535 = vmatpush1.msra.mxu0 0.0
      %536 = vmatprep.subr.mxu0 0.0
      %537 = vmatpush1.msra.mxu0 0.0
      %538 = vmatprep.subr.mxu0 0.0
      %539 = vmatpush1.msra.mxu0 0.0
      %540 = vmatprep.subr.mxu0 0.0
      %541 = vmatpush1.msra.mxu0 0.0
      %542 = vmatprep.subr.mxu0 0.0
      %543 = vmatpush1.msra.mxu0 0.0
      %544 = vmatprep.subr.mxu0 0.0
      %545 = vmatpush1.msra.mxu0 0.0
      %546 = vmatprep.subr.mxu0 0.0
      %547 = vmatpush1.msra.mxu0 0.0
      %548 = vmatprep.subr.mxu0 0.0
      %549 = vmatpush1.msra.mxu0 0.0
      %550 = vmatprep.subr.mxu0 0.0
      %551 = vmatpush1.msra.mxu0 %v518
      %552 = vmatprep.subr.mxu0 0.0
      %553 = vmatpush2.msra.mxu0 0.0
      %554 = vmatprep.subr.mxu0 0.0
      %555 = vmatpush2.msra.mxu0 0.0
      %556 = vmatprep.subr.mxu0 0.0
      %557 = vmatpush2.msra.mxu0 0.0
      %558 = vmatprep.subr.mxu0 0.0
      %559 = vmatpush2.msra.mxu0 0.0
      %560 = vmatprep.subr.mxu0 0.0
      %561 = vmatpush2.msra.mxu0 0.0
      %562 = vmatprep.subr.mxu0 0.0
      %563 = vmatpush2.msra.mxu0 0.0
      %564 = vmatprep.subr.mxu0 0.0
      %565 = vmatpush2.msra.mxu0 0.0
      %566 = vmatprep.subr.mxu0 0.0
      %567 = vmatpush2.msra.mxu0 0.0
      %568 = vmatprep.subr.mxu0 0.0
      %569 = vmatpush2.msra.mxu0 0.0
      %570 = vmatprep.subr.mxu0 0.0
      %571 = vmatpush2.msra.mxu0 0.0
      %572 = vmatprep.subr.mxu0 0.0
      %573 = vmatpush2.msra.mxu0 0.0
      %574 = vmatprep.subr.mxu0 0.0
      %575 = vmatpush2.msra.mxu0 0.0
      %576 = vmatprep.subr.mxu0 0.0
      %577 = vmatpush2.msra.mxu0 0.0
      %578 = vmatprep.subr.mxu0 0.0
      %579 = vmatpush2.msra.mxu0 0.0
      %580 = vmatprep.subr.mxu0 0.0
      %581 = vmatpush2.msra.mxu0 0.0
      %582 = vmatprep.subr.mxu0 0.0
      %583 = vmatpush2.msra.mxu0 0.0
      %584 = vmatprep.mubr.f32.mxu0 0.0
      %585 = vmatmul.mubr.f32.gmra.mxu0 %v470
      %v586 = vpop.f32.mrf.mxu0
      %v587 = vadd.f32 %v359, %v586
      %v588 = vpop.f32.mrf.mxu0
      %589 = vmatprep.mubr.f32.mxu0 0.0
      %590 = vmatmul.mubr.f32.gmra.mxu0 %v473
      %v591 = vpop.f32.mrf.mxu0
      %v592 = vadd.f32 %v364, %v591
      %v593 = vpop.f32.mrf.mxu0
      %594 = vmatprep.mubr.f32.mxu0 0.0
      %595 = vmatmul.mubr.f32.gmra.mxu0 %v476
      %v596 = vpop.f32.mrf.mxu0
      %v597 = vadd.f32 %v369, %v596
      %v598 = vpop.f32.mrf.mxu0
      %599 = vmatprep.mubr.f32.mxu0 0.0
      %600 = vmatmul.mubr.f32.gmra.mxu0 %v479
      %v601 = vpop.f32.mrf.mxu0
      %v602 = vadd.f32 %v374, %v601
      %v603 = vpop.f32.mrf.mxu0
      %604 = vmatprep.mubr.f32.mxu0 0.0
      %605 = vmatmul.mubr.f32.gmra.mxu0 %v482
      %v606 = vpop.f32.mrf.mxu0
      %v607 = vadd.f32 %v379, %v606
      %v608 = vpop.f32.mrf.mxu0
      %609 = vmatprep.mubr.f32.mxu0 0.0
      %610 = vmatmul.mubr.f32.gmra.mxu0 %v485
      %v611 = vpop.f32.mrf.mxu0
      %v612 = vadd.f32 %v384, %v611
      %v613 = vpop.f32.mrf.mxu0
      %614 = vmatprep.mubr.f32.mxu0 0.0
      %615 = vmatmul.mubr.f32.gmra.mxu0 %v488
      %v616 = vpop.f32.mrf.mxu0
      %v617 = vadd.f32 %v389, %v616
      %v618 = vpop.f32.mrf.mxu0
      %619 = vmatprep.mubr.f32.mxu0 0.0
      %620 = vmatmul.mubr.f32.gmra.mxu0 %v491
      %v621 = vpop.f32.mrf.mxu0
      %v622 = vadd.f32 %v394, %v621
      %v623 = vpop.f32.mrf.mxu0
      %624 = vmatprep.mubr.f32.mxu0 0.0
      %625 = vmatmul.mubr.f32.gmra.mxu0 %v494
      %v626 = vpop.f32.mrf.mxu0
      %v627 = vadd.f32 %v399, %v626
      %v628 = vpop.f32.mrf.mxu0
      %629 = vmatprep.mubr.f32.mxu0 0.0
      %630 = vmatmul.mubr.f32.gmra.mxu0 %v497
      %v631 = vpop.f32.mrf.mxu0
      %v632 = vadd.f32 %v404, %v631
      %v633 = vpop.f32.mrf.mxu0
      %634 = vmatprep.mubr.f32.mxu0 0.0
      %635 = vmatmul.mubr.f32.gmra.mxu0 %v500
      %v636 = vpop.f32.mrf.mxu0
      %v637 = vadd.f32 %v409, %v636
      %v638 = vpop.f32.mrf.mxu0
      %639 = vmatprep.mubr.f32.mxu0 0.0
      %640 = vmatmul.mubr.f32.gmra.mxu0 %v503
      %v641 = vpop.f32.mrf.mxu0
      %v642 = vadd.f32 %v414, %v641
      %v643 = vpop.f32.mrf.mxu0
      %644 = vmatprep.mubr.f32.mxu0 0.0
      %645 = vmatmul.mubr.f32.gmra.mxu0 %v506
      %v646 = vpop.f32.mrf.mxu0
      %v647 = vadd.f32 %v419, %v646
      %v648 = vpop.f32.mrf.mxu0
      %649 = vmatprep.mubr.f32.mxu0 0.0
      %650 = vmatmul.mubr.f32.gmra.mxu0 %v509
      %v651 = vpop.f32.mrf.mxu0
      %v652 = vadd.f32 %v424, %v651
      %v653 = vpop.f32.mrf.mxu0
      %654 = vmatprep.mubr.f32.mxu0 0.0
      %655 = vmatmul.mubr.f32.gmra.mxu0 %v512
      %v656 = vpop.f32.mrf.mxu0
      %v657 = vadd.f32 %v429, %v656
      %v658 = vpop.f32.mrf.mxu0
      %659 = vmatprep.mubr.f32.mxu0 0.0
      %660 = vmatmul.mubr.f32.gmra.mxu0 %v515
      %v661 = vpop.f32.mrf.mxu0
      %v662 = vadd.f32 %v434, %v661
      %v663 = vpop.f32.mrf.mxu0
      %664 = vdwg.mxu0
      %s665 = scalar_lea.vmem %s1, 8
      %v666 = vld [vmem:[%s665] sm:$0x7]
      %667 = vrot.lane.b32.xlu0 %v194, 126
      %v668 = vpop.permute.xlu0 %667
      %669 = vrot.lane.b32.xlu0 %v199, 126
      %v670 = vpop.permute.xlu0 %669
      %vm671 = vcmask 1031168
      %v672 = vsel %vm671, %v668, %v670
      %674 = vxpose.xlu0.b32.start [1/16] %v672, 128
      %675 = vxpose.xlu0.b32.cont [2/16] 0.0, 128
      %676 = vxpose.xlu0.b32.cont [3/16] 0.0, 128
      %677 = vxpose.xlu0.b32.cont [4/16] 0.0, 128
      %678 = vxpose.xlu0.b32.cont [5/16] 0.0, 128
      %679 = vxpose.xlu0.b32.cont [6/16] 0.0, 128
      %680 = vxpose.xlu0.b32.cont [7/16] 0.0, 128
      %681 = vxpose.xlu0.b32.cont [8/16] 0.0, 128
      %682 = vxpose.xlu0.b32.cont [9/16] 0.0, 128
      %683 = vxpose.xlu0.b32.cont [10/16] 0.0, 128
      %684 = vxpose.xlu0.b32.cont [11/16] 0.0, 128
      %685 = vxpose.xlu0.b32.cont [12/16] 0.0, 128
      %686 = vxpose.xlu0.b32.cont [13/16] 0.0, 128
      %687 = vxpose.xlu0.b32.cont [14/16] 0.0, 128
      %688 = vxpose.xlu0.b32.cont [15/16] 0.0, 128
      %689 = vxpose.xlu0.b32.end [16/16] 0.0, 128
      %v690 = vpop.trf.xlu0
      %v691 = vpop.trf.xlu0
      %v692 = vpop.trf.xlu0
      %v693 = vpop.trf.xlu0
      %v694 = vpop.trf.xlu0
      %v695 = vpop.trf.xlu0
      %v696 = vpop.trf.xlu0
      %v697 = vpop.trf.xlu0
      %v698 = vpop.trf.xlu0
      %v699 = vpop.trf.xlu0
      %v700 = vpop.trf.xlu0
      %v701 = vpop.trf.xlu0
      %v702 = vpop.trf.xlu0
      %v703 = vpop.trf.xlu0
      %v704 = vpop.trf.xlu0
      %v705 = vpop.trf.xlu0
      %v707 = vsel %vm239, %v690, 0
      %v710 = vsel %vm239, %v691, 0
      %v713 = vsel %vm239, %v692, 0
      %v716 = vsel %vm239, %v693, 0
      %v719 = vsel %vm239, %v694, 0
      %v722 = vsel %vm239, %v695, 0
      %v725 = vsel %vm239, %v696, 0
      %v728 = vsel %vm239, %v697, 0
      %v731 = vsel %vm239, %v698, 0
      %v734 = vsel %vm239, %v699, 0
      %v737 = vsel %vm239, %v700, 0
      %v740 = vsel %vm239, %v701, 0
      %v743 = vsel %vm239, %v702, 0
      %v746 = vsel %vm239, %v703, 0
      %v749 = vsel %vm239, %v704, 0
      %v752 = vsel %vm239, %v705, 0
      %v755 = vsel %vm288, %v666, 0
      %757 = vmatprep.subr.mxu0 0.0
      %758 = vmatpush1.msra.mxu0 0.0
      %759 = vmatprep.subr.mxu0 0.0
      %760 = vmatpush1.msra.mxu0 0.0
      %761 = vmatprep.subr.mxu0 0.0
      %762 = vmatpush1.msra.mxu0 0.0
      %763 = vmatprep.subr.mxu0 0.0
      %764 = vmatpush1.msra.mxu0 0.0
      %765 = vmatprep.subr.mxu0 0.0
      %766 = vmatpush1.msra.mxu0 0.0
      %767 = vmatprep.subr.mxu0 0.0
      %768 = vmatpush1.msra.mxu0 0.0
      %769 = vmatprep.subr.mxu0 0.0
      %770 = vmatpush1.msra.mxu0 0.0
      %771 = vmatprep.subr.mxu0 0.0
      %772 = vmatpush1.msra.mxu0 0.0
      %773 = vmatprep.subr.mxu0 0.0
      %774 = vmatpush1.msra.mxu0 0.0
      %775 = vmatprep.subr.mxu0 0.0
      %776 = vmatpush1.msra.mxu0 0.0
      %777 = vmatprep.subr.mxu0 0.0
      %778 = vmatpush1.msra.mxu0 0.0
      %779 = vmatprep.subr.mxu0 0.0
      %780 = vmatpush1.msra.mxu0 0.0
      %781 = vmatprep.subr.mxu0 0.0
      %782 = vmatpush1.msra.mxu0 0.0
      %783 = vmatprep.subr.mxu0 0.0
      %784 = vmatpush1.msra.mxu0 0.0
      %785 = vmatprep.subr.mxu0 0.0
      %786 = vmatpush1.msra.mxu0 0.0
      %787 = vmatprep.subr.mxu0 0.0
      %788 = vmatpush1.msra.mxu0 %v755
      %789 = vmatprep.subr.mxu0 0.0
      %790 = vmatpush2.msra.mxu0 0.0
      %791 = vmatprep.subr.mxu0 0.0
      %792 = vmatpush2.msra.mxu0 0.0
      %793 = vmatprep.subr.mxu0 0.0
      %794 = vmatpush2.msra.mxu0 0.0
      %795 = vmatprep.subr.mxu0 0.0
      %796 = vmatpush2.msra.mxu0 0.0
      %797 = vmatprep.subr.mxu0 0.0
      %798 = vmatpush2.msra.mxu0 0.0
      %799 = vmatprep.subr.mxu0 0.0
      %800 = vmatpush2.msra.mxu0 0.0
      %801 = vmatprep.subr.mxu0 0.0
      %802 = vmatpush2.msra.mxu0 0.0
      %803 = vmatprep.subr.mxu0 0.0
      %804 = vmatpush2.msra.mxu0 0.0
      %805 = vmatprep.subr.mxu0 0.0
      %806 = vmatpush2.msra.mxu0 0.0
      %807 = vmatprep.subr.mxu0 0.0
      %808 = vmatpush2.msra.mxu0 0.0
      %809 = vmatprep.subr.mxu0 0.0
      %810 = vmatpush2.msra.mxu0 0.0
      %811 = vmatprep.subr.mxu0 0.0
      %812 = vmatpush2.msra.mxu0 0.0
      %813 = vmatprep.subr.mxu0 0.0
      %814 = vmatpush2.msra.mxu0 0.0
      %815 = vmatprep.subr.mxu0 0.0
      %816 = vmatpush2.msra.mxu0 0.0
      %817 = vmatprep.subr.mxu0 0.0
      %818 = vmatpush2.msra.mxu0 0.0
      %819 = vmatprep.subr.mxu0 0.0
      %820 = vmatpush2.msra.mxu0 0.0
      %821 = vmatprep.mubr.f32.mxu0 0.0
      %822 = vmatmul.mubr.f32.gmra.mxu0 %v707
      %v823 = vpop.f32.mrf.mxu0
      %v824 = vadd.f32 0.0, %v823
      %v825 = vpop.f32.mrf.mxu0
      %826 = vmatprep.mubr.f32.mxu0 0.0
      %827 = vmatmul.mubr.f32.gmra.mxu0 %v710
      %v828 = vpop.f32.mrf.mxu0
      %v829 = vadd.f32 0.0, %v828
      %v830 = vpop.f32.mrf.mxu0
      %831 = vmatprep.mubr.f32.mxu0 0.0
      %832 = vmatmul.mubr.f32.gmra.mxu0 %v713
      %v833 = vpop.f32.mrf.mxu0
      %v834 = vadd.f32 0.0, %v833
      %v835 = vpop.f32.mrf.mxu0
      %836 = vmatprep.mubr.f32.mxu0 0.0
      %837 = vmatmul.mubr.f32.gmra.mxu0 %v716
      %v838 = vpop.f32.mrf.mxu0
      %v839 = vadd.f32 0.0, %v838
      %v840 = vpop.f32.mrf.mxu0
      %841 = vmatprep.mubr.f32.mxu0 0.0
      %842 = vmatmul.mubr.f32.gmra.mxu0 %v719
      %v843 = vpop.f32.mrf.mxu0
      %v844 = vadd.f32 0.0, %v843
      %v845 = vpop.f32.mrf.mxu0
      %846 = vmatprep.mubr.f32.mxu0 0.0
      %847 = vmatmul.mubr.f32.gmra.mxu0 %v722
      %v848 = vpop.f32.mrf.mxu0
      %v849 = vadd.f32 0.0, %v848
      %v850 = vpop.f32.mrf.mxu0
      %851 = vmatprep.mubr.f32.mxu0 0.0
      %852 = vmatmul.mubr.f32.gmra.mxu0 %v725
      %v853 = vpop.f32.mrf.mxu0
      %v854 = vadd.f32 0.0, %v853
      %v855 = vpop.f32.mrf.mxu0
      %856 = vmatprep.mubr.f32.mxu0 0.0
      %857 = vmatmul.mubr.f32.gmra.mxu0 %v728
      %v858 = vpop.f32.mrf.mxu0
      %v859 = vadd.f32 0.0, %v858
      %v860 = vpop.f32.mrf.mxu0
      %861 = vmatprep.mubr.f32.mxu0 0.0
      %862 = vmatmul.mubr.f32.gmra.mxu0 %v731
      %v863 = vpop.f32.mrf.mxu0
      %v864 = vadd.f32 0.0, %v863
      %v865 = vpop.f32.mrf.mxu0
      %866 = vmatprep.mubr.f32.mxu0 0.0
      %867 = vmatmul.mubr.f32.gmra.mxu0 %v734
      %v868 = vpop.f32.mrf.mxu0
      %v869 = vadd.f32 0.0, %v868
      %v870 = vpop.f32.mrf.mxu0
      %871 = vmatprep.mubr.f32.mxu0 0.0
      %872 = vmatmul.mubr.f32.gmra.mxu0 %v737
      %v873 = vpop.f32.mrf.mxu0
      %v874 = vadd.f32 0.0, %v873
      %v875 = vpop.f32.mrf.mxu0
      %876 = vmatprep.mubr.f32.mxu0 0.0
      %877 = vmatmul.mubr.f32.gmra.mxu0 %v740
      %v878 = vpop.f32.mrf.mxu0
      %v879 = vadd.f32 0.0, %v878
      %v880 = vpop.f32.mrf.mxu0
      %881 = vmatprep.mubr.f32.mxu0 0.0
      %882 = vmatmul.mubr.f32.gmra.mxu0 %v743
      %v883 = vpop.f32.mrf.mxu0
      %v884 = vadd.f32 0.0, %v883
      %v885 = vpop.f32.mrf.mxu0
      %886 = vmatprep.mubr.f32.mxu0 0.0
      %887 = vmatmul.mubr.f32.gmra.mxu0 %v746
      %v888 = vpop.f32.mrf.mxu0
      %v889 = vadd.f32 0.0, %v888
      %v890 = vpop.f32.mrf.mxu0
      %891 = vmatprep.mubr.f32.mxu0 0.0
      %892 = vmatmul.mubr.f32.gmra.mxu0 %v749
      %v893 = vpop.f32.mrf.mxu0
      %v894 = vadd.f32 0.0, %v893
      %v895 = vpop.f32.mrf.mxu0
      %896 = vmatprep.mubr.f32.mxu0 0.0
      %897 = vmatmul.mubr.f32.gmra.mxu0 %v752
      %v898 = vpop.f32.mrf.mxu0
      %v899 = vadd.f32 0.0, %v898
      %v900 = vpop.f32.mrf.mxu0
      %901 = vdwg.mxu0
      %v902 = vadd.f32 %v587, %v824
      %v903 = vadd.f32 %v592, %v829
      %v904 = vadd.f32 %v597, %v834
      %v905 = vadd.f32 %v602, %v839
      %v906 = vadd.f32 %v607, %v844
      %v907 = vadd.f32 %v612, %v849
      %v908 = vadd.f32 %v617, %v854
      %v909 = vadd.f32 %v622, %v859
      %v910 = vadd.f32 %v627, %v864
      %v911 = vadd.f32 %v632, %v869
      %v912 = vadd.f32 %v637, %v874
      %v913 = vadd.f32 %v642, %v879
      %v914 = vadd.f32 %v647, %v884
      %v915 = vadd.f32 %v652, %v889
      %v916 = vadd.f32 %v657, %v894
      %v917 = vadd.f32 %v662, %v899
      %v918 = vld [vmem:[%s2] sm:$0x1]
      %v920 = vlaneseq
      %v921 = vshrl.u32 %v920, 7
      %v922 = vsub.s32 0, %v921
      %v923 = vrot.slane %v918, %v922
      %v925 = vadd.f32 %v902, %v923
      %v926 = vadd.f32 %v903, %v923
      %v927 = vadd.f32 %v904, %v923
      %v928 = vadd.f32 %v905, %v923
      %v929 = vadd.f32 %v906, %v923
      %v930 = vadd.f32 %v907, %v923
      %v931 = vadd.f32 %v908, %v923
      %v932 = vadd.f32 %v909, %v923
      %v933 = vadd.f32 %v910, %v923
      %v934 = vadd.f32 %v911, %v923
      %v935 = vadd.f32 %v912, %v923
      %v936 = vadd.f32 %v913, %v923
      %v937 = vadd.f32 %v914, %v923
      %v938 = vadd.f32 %v915, %v923
      %v939 = vadd.f32 %v916, %v923
      %v940 = vadd.f32 %v917, %v923
      %vm941 = vcmask 261120
      %942 = vst.msk [vmem:[%s192] sm:$0xff] %vm941, %v925
      %943 = vst.msk [vmem:[%s192 + $0x8] sm:$0xff] %vm941, %v926
      %944 = vst.msk [vmem:[%s192 + $0x10] sm:$0xff] %vm941, %v927
      %945 = vst.msk [vmem:[%s192 + $0x18] sm:$0xff] %vm941, %v928
      %946 = vst.msk [vmem:[%s192 + $0x20] sm:$0xff] %vm941, %v929
      %947 = vst.msk [vmem:[%s192 + $0x28] sm:$0xff] %vm941, %v930
      %948 = vst.msk [vmem:[%s192 + $0x30] sm:$0xff] %vm941, %v931
      %949 = vst.msk [vmem:[%s192 + $0x38] sm:$0xff] %vm941, %v932
      %950 = vst.msk [vmem:[%s192 + $0x40] sm:$0xff] %vm941, %v933
      %951 = vst.msk [vmem:[%s192 + $0x48] sm:$0xff] %vm941, %v934
      %952 = vst.msk [vmem:[%s192 + $0x50] sm:$0xff] %vm941, %v935
      %953 = vst.msk [vmem:[%s192 + $0x58] sm:$0xff] %vm941, %v936
      %954 = vst.msk [vmem:[%s192 + $0x60] sm:$0xff] %vm941, %v937
      %955 = vst.msk [vmem:[%s192 + $0x68] sm:$0xff] %vm941, %v938
      %956 = vst.msk [vmem:[%s192 + $0x70] sm:$0xff] %vm941, %v939
      %957 = vst.msk [vmem:[%s192 + $0x78] sm:$0xff] %vm941, %v940
      %s958 = smul.u32 16, %s19
      %p959 = scmp.lt.s32.totalorder %s18, 1
      %s960 = scalar_select %p959, %s18, 1
      %p961 = scmp.lt.s32.totalorder %s958, 15
      %s962 = scalar_select %p961, %s958, 15
      %s963 = smul.addr %s960, 16
      %s964 = sadd.s32 %s962, %s963
      %s965 = smul.addr %s964, 8
      %s966 = scalar_lea.vmem %s3, %s965
      // Predicated region
      $region33: #{tpu_custom_call.1} parent=31 // pred_check
        %p967 = pneg %p114
      $region34: #{tpu_custom_call.1} parent=31 // pred_check_branch
        %969 = sbr.rel (%p967) target = $region36
      $region35: #{tpu_custom_call.1} parent=31 // pred_region
        %s970 = smul.u32 16, %s19
      $region36: #{tpu_custom_call.1} parent=31 // pred_fallthru
        _
    $region32: #{tpu_custom_call.1} parent=5 // pred_fallthru
      _
    %p971 = scmp.le.s32.totalorder 2, %s9
    // Predicated region
    $region37: #{tpu_custom_call.1} parent=5 // pred_check
      %p972 = pneg %p971
    $region38: #{tpu_custom_call.1} parent=5 // pred_check_branch
      %974 = sbr.rel (%p972) target = $region40
    $region39: #{tpu_custom_call.1} parent=5 // pred_region
      %s975 = ssub.s32 %s9, 2
      // Predicated region
      $region41: #{tpu_custom_call.1} parent=39 // pred_check
        %p976 = pneg %p120
      $region42: #{tpu_custom_call.1} parent=39 // pred_check_branch
        %978 = sbr.rel (%p976) target = $region44
      $region43: #{tpu_custom_call.1} parent=39 // pred_region
        %s979 = smul.u32 16, %s21
        %p980 = scmp.lt.s32.totalorder %s20, 1
        %s981 = scalar_select %p980, %s20, 1
        %p982 = scmp.lt.s32.totalorder %s979, 15
        %s983 = scalar_select %p982, %s979, 15
        %s984 = smul.addr %s981, 16
        %s985 = sadd.s32 %s983, %s984
        %s986 = smul.addr %s985, 8
        %s987 = scalar_lea.vmem %s3, %s986
      $region44: #{tpu_custom_call.1} parent=39 // pred_fallthru
        _
    $region40: #{tpu_custom_call.1} parent=5 // pred_fallthru
      _
  $region6: #{tpu_custom_call.1} parent=0 // loop_footer
    %s13 = sadd.s32 1, %s9
  $region7: #{tpu_custom_call.1} parent=0 // loop_footer_branch
    %8 = sbr.rel target = $region3
  $region8: #{tpu_custom_call.1} parent=0 // loop_exit
    _

</llo_original>
